<compile_context>
chip_gen: v6e
topology: v6e:2x2x1
jax: 0.10.0
libtpu: 0.0.40
codegen_flags: <defaults>
</compile_context>

<pallas_src>
import functools
import math

import jax
import jax.numpy as jnp
from jax.experimental import pallas as pl
from jax.experimental.pallas import tpu as pltpu


# ------------------------------ helpers ------------------------------------

def _round_up(x, m):
    return (x + m - 1) // m * m


def _pad_axis(x, axis, mult):
    size = x.shape[axis]
    pad = (-size) % mult
    if pad == 0:
        return x
    widths = [(0, 0)] * x.ndim
    widths[axis] = (0, pad)
    return jnp.pad(x, widths)


# --------------------------- tiled linear (+bias) ---------------------------

def _matmul_bias_kernel(x_ref, w_ref, b_ref, o_ref, acc_ref):
    k = pl.program_id(2)

    @pl.when(k == 0)
    def _():
        # accumulator starts at the bias -> no epilogue add
        acc_ref[...] = jnp.broadcast_to(b_ref[...], acc_ref.shape)

    acc_ref[...] += jnp.dot(x_ref[...], w_ref[...],
                            preferred_element_type=jnp.float32)

    @pl.when(k == pl.num_programs(2) - 1)
    def _():
        o_ref[...] = acc_ref[...].astype(o_ref.dtype)


def linear_pallas(x, w, b, *, tm=512, tn=256, tk=512, out_dtype=jnp.float32):
    """x:(M,K) @ w:(K,N) + b:(N,) -> (M,N); bf16 MXU operands, f32 accum."""
    M, K = x.shape
    N = w.shape[1]
    tm = min(tm, _round_up(M, 16))          # bf16 min sublane tile is 16
    tn = N if N <= tn else tn
    tk = K if K <= tk else tk
    xp = _pad_axis(_pad_axis(x.astype(jnp.bfloat16), 0, tm), 1, tk)
    wp = _pad_axis(_pad_axis(w.astype(jnp.bfloat16), 0, tk), 1, tn)
    bp = _pad_axis(b.reshape(1, N).astype(jnp.float32), 1, tn)
    Mp, Kp = xp.shape
    Np = wp.shape[1]
    out = pl.pallas_call(
        _matmul_bias_kernel,
        out_shape=jax.ShapeDtypeStruct((Mp, Np), out_dtype),
        grid=(Mp // tm, Np // tn, Kp // tk),
        in_specs=[
            pl.BlockSpec((tm, tk), lambda i, j, k: (i, k)),
            pl.BlockSpec((tk, tn), lambda i, j, k: (k, j)),
            pl.BlockSpec((1, tn), lambda i, j, k: (0, j)),
        ],
        out_specs=pl.BlockSpec((tm, tn), lambda i, j, k: (i, j)),
        scratch_shapes=[pltpu.VMEM((tm, tn), jnp.float32)],
        compiler_params=pltpu.CompilerParams(
            dimension_semantics=("parallel", "parallel", "arbitrary")),
    )(xp, wp, bp)
    return out[:M, :N]


# ----------------- fused out_proj + residual + LayerNorm ------------------

def _proj_res_ln_kernel(x_ref, w_ref, b_ref, r_ref, g_ref, be_ref, o_ref,
                        acc_ref, *, eps):
    k = pl.program_id(1)

    @pl.when(k == 0)
    def _():
        # accumulator starts at residual + bias
        acc_ref[...] = r_ref[...] + b_ref[...]

    acc_ref[...] += jnp.dot(x_ref[...], w_ref[...],
                            preferred_element_type=jnp.float32)

    @pl.when(k == pl.num_programs(1) - 1)
    def _():
        y = acc_ref[...]
        mu = jnp.mean(y, axis=-1, keepdims=True)
        var = jnp.mean(jnp.square(y - mu), axis=-1, keepdims=True)
        yn = (y - mu) * jax.lax.rsqrt(var + eps)
        o_ref[...] = (yn * g_ref[...] + be_ref[...]).astype(o_ref.dtype)


def proj_residual_ln_pallas(x, w, b, res, gamma, beta, *, eps=1e-5,
                            tm=256, tk=512):
    """LayerNorm(res + x @ w + b); x:(M,K) bf16, w:(K,E) bf16, res:(M,E) f32."""
    M, K = x.shape
    E = w.shape[1]
    tm = min(tm, _round_up(M, 16))
    tk = K if K <= tk else tk
    xp = _pad_axis(_pad_axis(x.astype(jnp.bfloat16), 0, tm), 1, tk)
    rp = _pad_axis(res, 0, tm)
    wp = _pad_axis(w.astype(jnp.bfloat16), 0, tk)
    Mp, Kp = xp.shape
    out = pl.pallas_call(
        functools.partial(_proj_res_ln_kernel, eps=eps),
        out_shape=jax.ShapeDtypeStruct((Mp, E), jnp.float32),
        grid=(Mp // tm, Kp // tk),
        in_specs=[
            pl.BlockSpec((tm, tk), lambda i, k: (i, k)),
            pl.BlockSpec((tk, E), lambda i, k: (k, 0)),
            pl.BlockSpec((1, E), lambda i, k: (0, 0)),
            pl.BlockSpec((tm, E), lambda i, k: (i, 0)),
            pl.BlockSpec((1, E), lambda i, k: (0, 0)),
            pl.BlockSpec((1, E), lambda i, k: (0, 0)),
        ],
        out_specs=pl.BlockSpec((tm, E), lambda i, k: (i, 0)),
        scratch_shapes=[pltpu.VMEM((tm, E), jnp.float32)],
        compiler_params=pltpu.CompilerParams(
            dimension_semantics=("parallel", "arbitrary")),
    )(xp, wp, b.reshape(1, E), rp, gamma.reshape(1, E), beta.reshape(1, E))
    return out[:M]


# -------- fused FFN (linear1 + GELU + linear2) + residual + LayerNorm -------

def _ffn_res_ln_kernel(y_ref, w1_ref, b1_ref, w2_ref, b2_ref, g_ref, be_ref,
                       o_ref, acc_ref, *, eps):
    f = pl.program_id(1)

    @pl.when(f == 0)
    def _():
        # accumulator starts at residual (layer input) + bias2
        acc_ref[...] = y_ref[...] + b2_ref[...]

    # (tm, tf) slice of the dff intermediate lives only in VMEM/vregs.
    y_bf = y_ref[...].astype(jnp.bfloat16)
    h = jnp.dot(y_bf, w1_ref[...],
                preferred_element_type=jnp.float32) + b1_ref[...]
    h = jax.nn.gelu(h, approximate=True).astype(jnp.bfloat16)
    acc_ref[...] += jnp.dot(h, w2_ref[...],
                            preferred_element_type=jnp.float32)

    @pl.when(f == pl.num_programs(1) - 1)
    def _():
        z = acc_ref[...]
        mu = jnp.mean(z, axis=-1, keepdims=True)
        var = jnp.mean(jnp.square(z - mu), axis=-1, keepdims=True)
        zn = (z - mu) * jax.lax.rsqrt(var + eps)
        o_ref[...] = (zn * g_ref[...] + be_ref[...]).astype(o_ref.dtype)


def ffn_residual_ln_pallas(y, w1, b1, w2, b2, gamma, beta, *, eps=1e-5,
                           tm=256, tf=256):
    M, E = y.shape
    F = w1.shape[1]
    tm = min(tm, _round_up(M, 16))
    tf = F if F <= tf else tf
    yp = _pad_axis(y, 0, tm)
    w1p = _pad_axis(w1.astype(jnp.bfloat16), 1, tf)
    b1p = _pad_axis(b1.reshape(1, F).astype(jnp.float32), 1, tf)
    w2p = _pad_axis(w2.astype(jnp.bfloat16), 0, tf)
    Mp = yp.shape[0]
    Fp = w1p.shape[1]
    out = pl.pallas_call(
        functools.partial(_ffn_res_ln_kernel, eps=eps),
        out_shape=jax.ShapeDtypeStruct((Mp, E), jnp.float32),
        grid=(Mp // tm, Fp // tf),
        in_specs=[
            pl.BlockSpec((tm, E), lambda i, f: (i, 0)),   # y (resident over f)
            pl.BlockSpec((E, tf), lambda i, f: (0, f)),   # w1 column stripe
            pl.BlockSpec((1, tf), lambda i, f: (0, f)),   # b1
            pl.BlockSpec((tf, E), lambda i, f: (f, 0)),   # w2 row stripe
            pl.BlockSpec((1, E), lambda i, f: (0, 0)),    # b2
            pl.BlockSpec((1, E), lambda i, f: (0, 0)),    # gamma
            pl.BlockSpec((1, E), lambda i, f: (0, 0)),    # beta
        ],
        out_specs=pl.BlockSpec((tm, E), lambda i, f: (i, 0)),
        scratch_shapes=[pltpu.VMEM((tm, E), jnp.float32)],
        compiler_params=pltpu.CompilerParams(
            dimension_semantics=("parallel", "arbitrary")),
    )(yp, w1p, b1p, w2p, b2.reshape(1, E), gamma.reshape(1, E),
      beta.reshape(1, E))
    return out[:M]


# ------------- multi-head attention: head-major, grid over (B, H) -----------

def _mha_kernel(q_ref, k_ref, v_ref, m_ref, o_ref):
    q = q_ref[0, 0]                        # (S, dh) bf16, Q pre-scaled 1/sqrt(dh)
    k = k_ref[0, 0]                        # (S, dh) bf16
    v = v_ref[0, 0]                        # (S, dh) bf16
    bias = m_ref[0]                        # (1, S) additive key-padding bias

    s = jnp.dot(q, k.T, preferred_element_type=jnp.float32)     # (S, S) f32
    s = s + bias
    s = s - jnp.max(s, axis=-1, keepdims=True)
    p = jnp.exp(s)
    p = p * pl.reciprocal(jnp.sum(p, axis=-1, keepdims=True), approx=True)
    o_ref[0, 0] = jnp.dot(p.astype(v.dtype), v,
                          preferred_element_type=jnp.float32).astype(o_ref.dtype)


def mha_pallas(q, k, v, mask_bias):
    """q,k,v: (B, H, S, dh) bf16 head-major; mask_bias: (B, 1, S) additive f32.
    Returns (B, H, S, dh) bf16."""
    B, H, S, dh = q.shape
    qkv_spec = pl.BlockSpec((1, 1, S, dh), lambda b, h: (b, h, 0, 0))
    return pl.pallas_call(
        _mha_kernel,
        out_shape=jax.ShapeDtypeStruct((B, H, S, dh), jnp.bfloat16),
        grid=(B, H),
        in_specs=[
            qkv_spec, qkv_spec, qkv_spec,
            pl.BlockSpec((1, 1, S), lambda b, h: (b, 0, 0)),
        ],
        out_specs=pl.BlockSpec((1, 1, S, dh), lambda b, h: (b, h, 0, 0)),
        compiler_params=pltpu.CompilerParams(
            dimension_semantics=("parallel", "parallel")),
    )(q, k, v, mask_bias)


# ------------------- fused (word_emb + pos_emb) + LayerNorm -----------------

def _emb_ln_kernel(we_ref, pos_ref, g_ref, b_ref, o_ref, *, eps):
    x = we_ref[0] + pos_ref[...]
    mu = jnp.mean(x, axis=-1, keepdims=True)
    var = jnp.mean(jnp.square(x - mu), axis=-1, keepdims=True)
    xn = (x - mu) * jax.lax.rsqrt(var + eps)
    o_ref[0] = (xn * g_ref[...] + b_ref[...]).astype(o_ref.dtype)


def embed_add_ln_pallas(word_emb_tok, pos_emb, gamma, beta, *, eps=1e-5):
    """word_emb_tok: (B, S, E) f32, pos_emb: (S, E) f32 -> LN(we + pos)."""
    B, S, E = word_emb_tok.shape
    return pl.pallas_call(
        functools.partial(_emb_ln_kernel, eps=eps),
        out_shape=jax.ShapeDtypeStruct((B, S, E), jnp.float32),
        grid=(B,),
        in_specs=[
            pl.BlockSpec((1, S, E), lambda b: (b, 0, 0)),
            pl.BlockSpec((S, E), lambda b: (0, 0)),
            pl.BlockSpec((1, E), lambda b: (0, 0)),
            pl.BlockSpec((1, E), lambda b: (0, 0)),
        ],
        out_specs=pl.BlockSpec((1, S, E), lambda b: (b, 0, 0)),
        compiler_params=pltpu.CompilerParams(
            dimension_semantics=("parallel",)),
    )(word_emb_tok, pos_emb, gamma.reshape(1, E), beta.reshape(1, E))


# --------------- fused mean-pool (dim=1, streamed) + final fc ----------------

def _pool_fc_kernel(h_ref, w_ref, b_ref, o_ref, acc_ref, *, inv_s):
    s = pl.program_id(1)

    @pl.when(s == 0)
    def _():
        acc_ref[...] = jnp.zeros_like(acc_ref)

    acc_ref[...] += jnp.sum(h_ref[...], axis=1)          # (tb, E) partial sum

    @pl.when(s == pl.num_programs(1) - 1)
    def _():
        pooled = (acc_ref[...] * inv_s).astype(jnp.bfloat16)
        o_ref[...] = (jnp.dot(pooled, w_ref[...],
                              preferred_element_type=jnp.float32)
                      + b_ref[...]).astype(o_ref.dtype)


def mean_pool_fc_pallas(h, w_fc, b_fc, *, tb=8, ts=128):
    """h: (B, S, E) -> mean over S -> @ w_fc (E, D) + b_fc -> (B, D).
    S is streamed as a reduction grid axis (no (B,S,E) slab in VMEM)."""
    B, S, E = h.shape
    D = w_fc.shape[1]
    tb = min(tb, _round_up(B, 8))
    ts = min(ts, _round_up(S, 8))
    hp = _pad_axis(_pad_axis(h, 0, tb), 1, ts)           # zero-padded -> sum ok
    wp = _pad_axis(w_fc.astype(jnp.bfloat16), 1, 128)    # lane-dense output
    bp = _pad_axis(b_fc.reshape(1, D).astype(jnp.float32), 1, 128)
    Bp, Sp = hp.shape[0], hp.shape[1]
    Dp = wp.shape[1]
    out = pl.pallas_call(
        functools.partial(_pool_fc_kernel, inv_s=1.0 / S),
        out_shape=jax.ShapeDtypeStruct((Bp, Dp), jnp.float32),
        grid=(Bp // tb, Sp // ts),
        in_specs=[
            pl.BlockSpec((tb, ts, E), lambda i, s: (i, s, 0)),
            pl.BlockSpec((E, Dp), lambda i, s: (0, 0)),
            pl.BlockSpec((1, Dp), lambda i, s: (0, 0)),
        ],
        out_specs=pl.BlockSpec((tb, Dp), lambda i, s: (i, 0)),
        scratch_shapes=[pltpu.VMEM((tb, E), jnp.float32)],
        compiler_params=pltpu.CompilerParams(
            dimension_semantics=("parallel", "arbitrary")),
    )(hp, wp, bp)
    return out[:B, :D]


# ---------------------------- model (wrapper) -------------------------------

def encoder_layer_pallas(x2d, lp, B, S, nhead, mask_bias, eps=1e-5):
    BS, E = x2d.shape
    dh = E // nhead
    # packed QKV projection (tiled, bf16 output to halve the HBM round-trip);
    # 1/sqrt(dh) already folded into the Q slice of w_qkv / b_qkv at init.
    qkv = linear_pallas(x2d, lp["w_qkv"], lp["b_qkv"],
                        out_dtype=jnp.bfloat16)
    # head-major layout: (B, S, 3, H, dh) -> (3, B, H, S, dh)
    qkv = qkv.reshape(B, S, 3, nhead, dh).transpose(2, 0, 3, 1, 4)
    attn = mha_pallas(qkv[0], qkv[1], qkv[2], mask_bias)       # (B, H, S, dh)
    attn2d = attn.transpose(0, 2, 1, 3).reshape(BS, E)         # (B*S, E) bf16
    # out_proj + residual + LayerNorm1, fused
    y = proj_residual_ln_pallas(attn2d, lp["w_o"], lp["b_o"],
                                x2d, lp["g1"], lp["be1"], eps=eps)
    # FFN (linear1 + GELU + linear2) + residual + LayerNorm2, fused
    z = ffn_residual_ln_pallas(y, lp["w1"], lp["b1"], lp["w2"], lp["b2"],
                               lp["g2"], lp["be2"], eps=eps)
    return z


def unixcoder_forward_pallas(input_ids, attention_mask, params, nhead,
                             eps=1e-5):
    """input_ids: (B, S) int; attention_mask: (B, S) {0,1} -> (B, out_dim)."""
    B, S = input_ids.shape
    E = params["word_emb"].shape[1]
    # TODO(synk): embedding gather has no clean rectangular-tile Pallas form;
    #             jnp.take stays in XLA.
    we = jnp.take(params["word_emb"], input_ids, axis=0)        # (B, S, E)
    h = embed_add_ln_pallas(we, params["pos_emb"][:S],
                            params["ln_g"], params["ln_b"], eps=eps)
    h = h.reshape(B * S, E)
    mask_bias = ((1.0 - attention_mask.astype(jnp.float32)) * (-1e9))
    mask_bias = mask_bias.reshape(B, 1, S)
    for lp in params["layers"]:
        h = encoder_layer_pallas(h, lp, B, S, nhead, mask_bias, eps)
    # `.mean(dim=1)` + self.fc, fused & streamed over S
    return mean_pool_fc_pallas(h.reshape(B, S, E),
                               params["w_fc"], params["b_fc"])


def init_params(key, vocab, max_pos, d_model, nhead, dff, out_dim, nlayers):
    dh = d_model // nhead
    keys = iter(jax.random.split(key, 4 + 8 * nlayers))

    def xavier(k, shape):
        fan_in, fan_out = shape
        limit = math.sqrt(6.0 / (fan_in + fan_out))
        return jax.random.uniform(k, shape, jnp.float32, -limit, limit)

    # matmul weights are stored bf16 (MXU-native); biases / LN params / embeds
    # stay f32.
    params = dict(
        word_emb=0.02 * jax.random.normal(next(keys), (vocab, d_model),
                                          jnp.float32),
        pos_emb=0.02 * jax.random.normal(next(keys), (max_pos, d_model),
                                         jnp.float32),
        ln_g=jnp.ones((d_model,), jnp.float32),
        ln_b=jnp.zeros((d_model,), jnp.float32),
        w_fc=xavier(next(keys), (d_model, out_dim)).astype(jnp.bfloat16),
        b_fc=0.01 * jax.random.normal(next(keys), (out_dim,), jnp.float32),
        layers=[],
    )
    # fold 1/sqrt(dh) attention scale into the Q slice of w_qkv / b_qkv
    qscale = jnp.concatenate([
        jnp.full((d_model,), 1.0 / math.sqrt(dh), jnp.float32),
        jnp.ones((2 * d_model,), jnp.float32),
    ])
    for _ in range(nlayers):
        params["layers"].append(dict(
            w_qkv=(xavier(next(keys), (d_model, 3 * d_model))
                   * qscale[None, :]).astype(jnp.bfloat16),
            b_qkv=0.01 * jax.random.normal(next(keys), (3 * d_model,),
                                           jnp.float32) * qscale,
            w_o=xavier(next(keys), (d_model, d_model)).astype(jnp.bfloat16),
            b_o=0.01 * jax.random.normal(next(keys), (d_model,), jnp.float32),
            g1=jnp.ones((d_model,), jnp.float32),
            be1=jnp.zeros((d_model,), jnp.float32),
            w1=xavier(next(keys), (d_model, dff)).astype(jnp.bfloat16),
            b1=0.01 * jax.random.normal(next(keys), (dff,), jnp.float32),
            w2=xavier(next(keys), (dff, d_model)).astype(jnp.bfloat16),
            b2=0.01 * jax.random.normal(next(keys), (d_model,), jnp.float32),
            g2=jnp.ones((d_model,), jnp.float32),
            be2=jnp.zeros((d_model,), jnp.float32),
        ))
    return params


# ---------------------------- pure-JAX reference ----------------------------

def reference_forward(input_ids, attention_mask, params, nhead, eps=1e-5):
    B, S = input_ids.shape
    E = params["word_emb"].shape[1]
    dh = E // nhead
    f32 = jnp.float32

    def ln(t, g, b):
        mu = jnp.mean(t, axis=-1, keepdims=True)
        var = jnp.mean(jnp.square(t - mu), axis=-1, keepdims=True)
        return (t - mu) / jnp.sqrt(var + eps) * g + b

    h = params["word_emb"][input_ids] + params["pos_emb"][:S][None]
    h = ln(h, params["ln_g"], params["ln_b"])
    bias = (1.0 - attention_mask.astype(f32)) * (-1e9)           # (B, S)
    for lp in params["layers"]:
        x = h
        qkv = x @ lp["w_qkv"].astype(f32) + lp["b_qkv"]          # (B, S, 3E)
        q, k, v = jnp.split(qkv, 3, axis=-1)
        qh = q.reshape(B, S, nhead, dh).transpose(0, 2, 1, 3)
        kh = k.reshape(B, S, nhead, dh).transpose(0, 2, 1, 3)
        vh = v.reshape(B, S, nhead, dh).transpose(0, 2, 1, 3)
        # NOTE: 1/sqrt(dh) is already folded into w_qkv/b_qkv at init.
        s = jnp.einsum("bhqd,bhkd->bhqk", qh, kh) + bias[:, None, None, :]
        p = jax.nn.softmax(s, axis=-1)
        o = jnp.einsum("bhqk,bhkd->bhqd", p, vh)
        o = o.transpose(0, 2, 1, 3).reshape(B, S, E)
        o = o @ lp["w_o"].astype(f32) + lp["b_o"]
        h = ln(x + o, lp["g1"], lp["be1"])
        ff = jax.nn.gelu(h @ lp["w1"].astype(f32) + lp["b1"], approximate=True)
        ff = ff @ lp["w2"].astype(f32) + lp["b2"]
        h = ln(h + ff, lp["g2"], lp["be2"])
    pooled = h.mean(axis=1)
    return pooled @ params["w_fc"].astype(f32) + params["b_fc"]


if __name__ == "__main__":
    B, S, E, NHEAD, DFF = 2, 8, 32, 4, 64
    VOCAB, OUT_DIM, NLAYERS = 64, 16, 2

    key = jax.random.PRNGKey(0)
    kp, kid = jax.random.split(key)
    params = init_params(kp, VOCAB, S, E, NHEAD, DFF, OUT_DIM, NLAYERS)
    input_ids = jax.random.randint(kid, (B, S), 0, VOCAB)
    attention_mask = jnp.ones((B, S), jnp.float32).at[1, 6:].set(0.0)

    out = unixcoder_forward_pallas(input_ids, attention_mask, params, NHEAD)
    out = jax.block_until_ready(out)

    ref = reference_forward(input_ids, attention_mask, params, NHEAD)
    assert out.shape == (B, OUT_DIM)
    err = float(jnp.max(jnp.abs(out - ref)))
    # tolerance covers bf16 activation rounding in the MXU paths plus the EUP
    # approximate reciprocal used in the softmax (reference is pure f32)
    assert jnp.allclose(out, ref, atol=4e-2, rtol=4e-2), err

    print("KERNEL_OK")
</pallas_src>

<mosaic_0001>
module attributes {stable_mosaic.version = 11 : i64} {
  func.func @_emb_ln_kernel(%arg0: i32, %arg1: memref<1x8x32xf32, #tpu.memory_space<vmem>>, %arg2: memref<8x32xf32, #tpu.memory_space<vmem>>, %arg3: memref<1x32xf32, #tpu.memory_space<vmem>>, %arg4: memref<1x32xf32, #tpu.memory_space<vmem>>, %arg5: memref<1x8x32xf32, #tpu.memory_space<vmem>>) attributes {dimension_semantics = [#tpu.dimension_semantics<parallel>], iteration_bounds = array<i64: 2>, scalar_prefetch = 0 : i64, scratch_operands = 0 : i64, tpu.core_type = #tpu.core_type<tc>, window_params = [{transform_indices = @transform_0, window_bounds = array<i64: 1, 8, 32>}, {pipeline_mode = #tpu.pipeline_mode<synchronous>, transform_indices = @transform_1, window_bounds = array<i64: 8, 32>}, {pipeline_mode = #tpu.pipeline_mode<synchronous>, transform_indices = @transform_2, window_bounds = array<i64: 1, 32>}, {pipeline_mode = #tpu.pipeline_mode<synchronous>, transform_indices = @transform_3, window_bounds = array<i64: 1, 32>}, {transform_indices = @transform_4, window_bounds = array<i64: 1, 8, 32>}]} {
    %c0 = arith.constant 0 : index
    %c0_0 = arith.constant 0 : index
    %c0_1 = arith.constant 0 : index
    %0 = vector.load %arg1[%c0, %c0_0, %c0_1] : memref<1x8x32xf32, #tpu.memory_space<vmem>>, vector<1x8x32xf32>
    %1 = vector.shape_cast %0 : vector<1x8x32xf32> to vector<8x32xf32>
    %c0_2 = arith.constant 0 : index
    %c0_3 = arith.constant 0 : index
    %2 = vector.load %arg2[%c0_2, %c0_3] : memref<8x32xf32, #tpu.memory_space<vmem>>, vector<8x32xf32>
    %3 = arith.addf %1, %2 : vector<8x32xf32>
    %cst = arith.constant dense<0.000000e+00> : vector<8xf32>
    %4 = vector.multi_reduction <add>, %3, %cst [1] : vector<8x32xf32> to vector<8xf32>
    %5 = vector.shape_cast %4 : vector<8xf32> to vector<8x1xf32>
    %cst_4 = arith.constant 3.200000e+01 : f32
    %6 = vector.broadcast %cst_4 : f32 to vector<8x1xf32>
    %7 = arith.divf %5, %6 : vector<8x1xf32>
    %8 = vector.broadcast %7 : vector<8x1xf32> to vector<8x32xf32>
    %9 = arith.subf %3, %8 : vector<8x32xf32>
    %10 = arith.mulf %9, %9 : vector<8x32xf32>
    %cst_5 = arith.constant dense<0.000000e+00> : vector<8xf32>
    %11 = vector.multi_reduction <add>, %10, %cst_5 [1] : vector<8x32xf32> to vector<8xf32>
    %12 = vector.shape_cast %11 : vector<8xf32> to vector<8x1xf32>
    %cst_6 = arith.constant 3.200000e+01 : f32
    %13 = vector.broadcast %cst_6 : f32 to vector<8x1xf32>
    %14 = arith.divf %12, %13 : vector<8x1xf32>
    %15 = vector.broadcast %7 : vector<8x1xf32> to vector<8x32xf32>
    %16 = arith.subf %3, %15 : vector<8x32xf32>
    %cst_7 = arith.constant 9.99999974E-6 : f32
    %17 = vector.broadcast %cst_7 : f32 to vector<8x1xf32>
    %18 = arith.addf %14, %17 : vector<8x1xf32>
    %19 = math.rsqrt %18 : vector<8x1xf32>
    %20 = vector.broadcast %19 : vector<8x1xf32> to vector<8x32xf32>
    %21 = arith.mulf %16, %20 : vector<8x32xf32>
    %c0_8 = arith.constant 0 : index
    %c0_9 = arith.constant 0 : index
    %22 = vector.load %arg3[%c0_8, %c0_9] : memref<1x32xf32, #tpu.memory_space<vmem>>, vector<1x32xf32>
    %23 = vector.broadcast %22 : vector<1x32xf32> to vector<8x32xf32>
    %24 = arith.mulf %21, %23 : vector<8x32xf32>
    %c0_10 = arith.constant 0 : index
    %c0_11 = arith.constant 0 : index
    %25 = vector.load %arg4[%c0_10, %c0_11] : memref<1x32xf32, #tpu.memory_space<vmem>>, vector<1x32xf32>
    %26 = vector.broadcast %25 : vector<1x32xf32> to vector<8x32xf32>
    %27 = arith.addf %24, %26 : vector<8x32xf32>
    %c0_12 = arith.constant 0 : index
    %c0_13 = arith.constant 0 : index
    %c0_14 = arith.constant 0 : index
    %28 = vector.load %arg5[%c0_12, %c0_13, %c0_14] : memref<1x8x32xf32, #tpu.memory_space<vmem>>, vector<1x8x32xf32>
    %29 = vector.shape_cast %28 : vector<1x8x32xf32> to vector<8x32xf32>
    %30 = vector.shape_cast %27 : vector<8x32xf32> to vector<1x8x32xf32>
    tpu.vector_store %arg5[%c0_12, %c0_13, %c0_14], %30 {strides = array<i32>} : memref<1x8x32xf32, #tpu.memory_space<vmem>>, vector<1x8x32xf32>,
    return
  }
  func.func @transform_0(%arg0: i32) -> (i32, i32, i32) {
    %c0_i32 = arith.constant 0 : i32
    %c0_i32_0 = arith.constant 0 : i32
    %c0_i32_1 = arith.constant 0 : i32
    return %arg0, %c0_i32, %c0_i32_0 : i32, i32, i32
  }
  func.func @transform_1(%arg0: i32) -> (i32, i32) {
    %c0_i32 = arith.constant 0 : i32
    %c0_i32_0 = arith.constant 0 : i32
    %c0_i32_1 = arith.constant 0 : i32
    return %c0_i32, %c0_i32_0 : i32, i32
  }
  func.func @transform_2(%arg0: i32) -> (i32, i32) {
    %c0_i32 = arith.constant 0 : i32
    %c0_i32_0 = arith.constant 0 : i32
    %c0_i32_1 = arith.constant 0 : i32
    return %c0_i32, %c0_i32_0 : i32, i32
  }
  func.func @transform_3(%arg0: i32) -> (i32, i32) {
    %c0_i32 = arith.constant 0 : i32
    %c0_i32_0 = arith.constant 0 : i32
    %c0_i32_1 = arith.constant 0 : i32
    return %c0_i32, %c0_i32_0 : i32, i32
  }
  func.func @transform_4(%arg0: i32) -> (i32, i32, i32) {
    %c0_i32 = arith.constant 0 : i32
    %c0_i32_0 = arith.constant 0 : i32
    %c0_i32_1 = arith.constant 0 : i32
    return %arg0, %c0_i32, %c0_i32_0 : i32, i32, i32
  }
}

</mosaic_0001>

<llo_original>
// kernel: tpu_custom_call.1
$region0: #{tpu_custom_call.1}
  #allocation0 [shape = 'u32[]', space=smem, size = 0x4, offset = 0x4, fixed_abs, tag = 'smem constant byte address 0x4 - core index']
  #allocation1 [shape = 'u32[144,128]{1,0:T(1,128)}', space=vmem, size = 0x12000, scoped, tag = 'internal scratch']
  %s0 = inlined_call_operand.hbm [shape: f32[2,8,32], index: 0, kind: input, shape index: {}]
  %s1 = inlined_call_operand.hbm [shape: f32[8,32], index: 1, kind: input, shape index: {}]
  %s2 = inlined_call_operand.vmem [shape: f32[1,32], index: 2, kind: input, shape index: {}]
  %s3 = inlined_call_operand.vmem [shape: f32[1,32], index: 3, kind: input, shape index: {}]
  %s4 = inlined_call_operand.hbm [shape: f32[2,8,32], index: 4, kind: output, shape index: {}]
  %s5 = sld [smem:[#allocation0]]
  $region57: #{tpu_custom_call.1} parent=0
    _
  %s7 = ssub.s32 1, %s5
  %s8 = scalar_select 0, %s7, %s5
  $region1: #{tpu_custom_call.1} parent=0
    #allocation2 [shape = 'u8[8192]{0}', space=vmem, size = 0x2000, scoped, tag = 'input window, operand 0']
    #allocation3 [shape = 's32[2]{0}', space=sflag, size = 0x8, scoped, tag = 'scoped memory for tpu_custom_call.1']
    #allocation4 [shape = 's32[2]{0}', space=sflag, size = 0x8, scoped, tag = 'scoped memory for tpu_custom_call.1']
    #allocation5 [shape = 'u8[4096]{0}', space=vmem, size = 0x1000, scoped, tag = 'input window, operand 1, single buffered']
    #allocation6 [shape = 's32[1]{0}', space=sflag, size = 0x4, scoped, tag = 'scoped memory for tpu_custom_call.1']
    #allocation7 [shape = 'u8[8192]{0}', space=vmem, size = 0x2000, scoped, tag = 'output window, operand 0']
    %9 = vsyncpa [#allocation3], 0
    %s10 = scalar_lea.sflag [#allocation3], 1
    %11 = vsyncpa %s10, 0
    %12 = vsyncpa [#allocation6], 0
    %13 = vsyncpa [#allocation4], 0
    %s14 = scalar_lea.sflag [#allocation4], 1
    %15 = vsyncpa %s14, 0
    loop: start=0, step=1, limit=4
    $region2: #{tpu_custom_call.1} parent=1 // loop_pre_header
      _
    $region3: #{tpu_custom_call.1} parent=1 // loop_header
      %s17 = sphi 0, %s21
      %p18 = scmp.ge.s32.totalorder %s17, 4
      %s27 = sphi 0, %s29
      %s30 = sphi 0, %s27
      %s31 = sphi 0, %s30
      %s47 = sphi 0, %s31
      %s51 = sphi 0, %s51
      %s53 = sphi 0, %s51
      %s54 = sphi 0, %s53
      %s68 = sphi 0, %s54
      %s72 = sphi 0, %s72
      %s74 = sphi 0, %s72
      %s75 = sphi 0, %s74
      %s89 = sphi 0, %s75
      %s93 = sphi 0, %s93
      %s95 = sphi 0, %s93
      %s96 = sphi 0, %s95
      %s110 = sphi 0, %s96
      %s116 = sphi 0, %s118
      %s119 = sphi 0, %s116
      %s120 = sphi 0, %s119
      %s136 = sphi 0, %s120
    $region4: #{tpu_custom_call.1} parent=1 // loop_header_branch
      %20 = sbr.rel (%p18) target = $region8
    $region5: #{tpu_custom_call.1} parent=1 // loop_body
      %s22 = ssub.s32 %s17, 1
      %s23 = ssub.s32 %s17, 2
      %s24 = sadd.s32 %s17, 1
      %s25 = ssub.s32 %s17, %s24
      %p26 = scmp.eq.s32.totalorder %s25, 0
      %s28 = sadd.s32 %s27, 1
      %s29 = scalar_select %p26, %s27, %s28
      %p32 = pneg %p26
      %p33 = scmp.eq.s32.totalorder %s17, 1
      %p34 = por %p32, %p33
      %p35 = scmp.ne.s32.totalorder %s27, %s30
      %p36 = scmp.eq.s32.totalorder %s17, 0
      %p37 = por %p35, %p36
      %p38 = scmp.ne.s32.totalorder %s27, %s30
      %p39 = scmp.eq.s32.totalorder %s22, 1
      %p40 = por %p38, %p39
      %p41 = scmp.ne.s32.totalorder %s30, %s31
      %p42 = scmp.eq.s32.totalorder %s22, 0
      %p43 = por %p41, %p42
      %p44 = scmp.ne.s32.totalorder %s30, %s31
      %p45 = scmp.eq.s32.totalorder %s23, 1
      %p46 = por %p44, %p45
      %p48 = scmp.ne.s32.totalorder %s31, %s47
      %p49 = scmp.eq.s32.totalorder %s23, 0
      %p50 = por %p48, %p49
      %s52 = sadd.s32 %s51, 1
      %p55 = scmp.eq.s32.totalorder %s17, 1
      %p56 = scmp.ne.s32.totalorder %s51, %s53
      %p57 = scmp.eq.s32.totalorder %s17, 0
      %p58 = por %p56, %p57
      %p59 = scmp.ne.s32.totalorder %s51, %s53
      %p60 = scmp.eq.s32.totalorder %s22, 1
      %p61 = por %p59, %p60
      %p62 = scmp.ne.s32.totalorder %s53, %s54
      %p63 = scmp.eq.s32.totalorder %s22, 0
      %p64 = por %p62, %p63
      %p65 = scmp.ne.s32.totalorder %s53, %s54
      %p66 = scmp.eq.s32.totalorder %s23, 1
      %p67 = por %p65, %p66
      %p69 = scmp.ne.s32.totalorder %s54, %s68
      %p70 = scmp.eq.s32.totalorder %s23, 0
      %p71 = por %p69, %p70
      %s73 = sadd.s32 %s72, 1
      %p76 = scmp.eq.s32.totalorder %s17, 1
      %p77 = scmp.ne.s32.totalorder %s72, %s74
      %p78 = scmp.eq.s32.totalorder %s17, 0
      %p79 = por %p77, %p78
      %p80 = scmp.ne.s32.totalorder %s72, %s74
      %p81 = scmp.eq.s32.totalorder %s22, 1
      %p82 = por %p80, %p81
      %p83 = scmp.ne.s32.totalorder %s74, %s75
      %p84 = scmp.eq.s32.totalorder %s22, 0
      %p85 = por %p83, %p84
      %p86 = scmp.ne.s32.totalorder %s74, %s75
      %p87 = scmp.eq.s32.totalorder %s23, 1
      %p88 = por %p86, %p87
      %p90 = scmp.ne.s32.totalorder %s75, %s89
      %p91 = scmp.eq.s32.totalorder %s23, 0
      %p92 = por %p90, %p91
      %s94 = sadd.s32 %s93, 1
      %p97 = scmp.eq.s32.totalorder %s17, 1
      %p98 = scmp.ne.s32.totalorder %s93, %s95
      %p99 = scmp.eq.s32.totalorder %s17, 0
      %p100 = por %p98, %p99
      %p101 = scmp.ne.s32.totalorder %s93, %s95
      %p102 = scmp.eq.s32.totalorder %s22, 1
      %p103 = por %p101, %p102
      %p104 = scmp.ne.s32.totalorder %s95, %s96
      %p105 = scmp.eq.s32.totalorder %s22, 0
      %p106 = por %p104, %p105
      %p107 = scmp.ne.s32.totalorder %s95, %s96
      %p108 = scmp.eq.s32.totalorder %s23, 1
      %p109 = por %p107, %p108
      %p111 = scmp.ne.s32.totalorder %s96, %s110
      %p112 = scmp.eq.s32.totalorder %s23, 0
      %p113 = por %p111, %p112
      %s114 = ssub.s32 %s17, %s24
      %p115 = scmp.eq.s32.totalorder %s114, 0
      %s117 = sadd.s32 %s116, 1
      %s118 = scalar_select %p115, %s116, %s117
      %p121 = pneg %p115
      %p122 = scmp.eq.s32.totalorder %s17, 1
      %p123 = por %p121, %p122
      %p124 = scmp.ne.s32.totalorder %s116, %s119
      %p125 = scmp.eq.s32.totalorder %s17, 0
      %p126 = por %p124, %p125
      %p127 = scmp.ne.s32.totalorder %s116, %s119
      %p128 = scmp.eq.s32.totalorder %s22, 1
      %p129 = por %p127, %p128
      %p130 = scmp.ne.s32.totalorder %s119, %s120
      %p131 = scmp.eq.s32.totalorder %s22, 0
      %p132 = por %p130, %p131
      %p133 = scmp.ne.s32.totalorder %s119, %s120
      %p134 = scmp.eq.s32.totalorder %s23, 1
      %p135 = por %p133, %p134
      %p137 = scmp.ne.s32.totalorder %s120, %s136
      %p138 = scmp.eq.s32.totalorder %s23, 0
      %p139 = por %p137, %p138
      %p140 = scmp.le.s32.totalorder 1, %s17
      %p141 = scmp.lt.s32.totalorder %s17, 3
      %p142 = pnand %p140, %p141
      %p143 = pneg %p142
      // Predicated region
      $region9: #{tpu_custom_call.1} parent=5 // pred_check
        _
      $region10: #{tpu_custom_call.1} parent=5 // pred_check_branch
        %145 = sbr.rel (%p142) target = $region12
      $region11: #{tpu_custom_call.1} parent=5 // pred_region
        %s146 = ssub.s32 %s17, 1
        // Predicated region
        $region13: #{tpu_custom_call.1} parent=11 // pred_check
          %p147 = pneg %p64
        $region14: #{tpu_custom_call.1} parent=11 // pred_check_branch
          %149 = sbr.rel (%p147) target = $region16
        $region15: #{tpu_custom_call.1} parent=11 // pred_region
          %s151 = ssub.s32 128, 128
          %152 = vsyncadd [#allocation6], %s151
          %s154 = sshll.u32 [#allocation5], 4
          %s155 = int_to_ptr.vmem [resolvable:$true] %s154
          %157 = dma.hbm_to_vmem [thread:$0]  %s1, 128, %s155, [#allocation6]
        $region16: #{tpu_custom_call.1} parent=11 // pred_fallthru
          _
        // Predicated region
        $region17: #{tpu_custom_call.1} parent=11 // pred_check
          %p158 = pneg %p85
        $region18: #{tpu_custom_call.1} parent=11 // pred_check_branch
          %160 = sbr.rel (%p158) target = $region20
        $region19: #{tpu_custom_call.1} parent=11 // pred_region
          _
        $region20: #{tpu_custom_call.1} parent=11 // pred_fallthru
          _
        // Predicated region
        $region21: #{tpu_custom_call.1} parent=11 // pred_check
          %p161 = pneg %p106
        $region22: #{tpu_custom_call.1} parent=11 // pred_check_branch
          %163 = sbr.rel (%p161) target = $region24
        $region23: #{tpu_custom_call.1} parent=11 // pred_region
          _
        $region24: #{tpu_custom_call.1} parent=11 // pred_fallthru
          _
      $region12: #{tpu_custom_call.1} parent=5 // pred_fallthru
        _
      %p164 = scmp.lt.s32.totalorder %s17, 2
      // Predicated region
      $region25: #{tpu_custom_call.1} parent=5 // pred_check
        %p165 = pneg %p164
      $region26: #{tpu_custom_call.1} parent=5 // pred_check_branch
        %167 = sbr.rel (%p165) target = $region28
      $region27: #{tpu_custom_call.1} parent=5 // pred_region
        // Predicated region
        $region29: #{tpu_custom_call.1} parent=27 // pred_check
          %p168 = pneg %p37
        $region30: #{tpu_custom_call.1} parent=27 // pred_check_branch
          %170 = sbr.rel (%p168) target = $region32
        $region31: #{tpu_custom_call.1} parent=27 // pred_region
          %s171 = sand.u32 %s27, 1
          %s172 = scalar_lea.sflag [#allocation3], %s171
          %s173 = sand.u32 %s27, 1
          %s174 = smul.addr %s173, 8
          %s175 = scalar_lea.vmem [#allocation2], %s174
          %s177 = ssub.s32 128, 128
          %178 = vsyncadd %s172, %s177
          %s179 = smul.addr %s17, 128
          %s180 = scalar_lea.hbm %s0, %s179
          %s182 = sshll.u32 %s175, 4
          %s183 = int_to_ptr.vmem [resolvable:$true] %s182
          %185 = dma.hbm_to_vmem [thread:$0]  %s180, 128, %s183, %s172
        $region32: #{tpu_custom_call.1} parent=27 // pred_fallthru
          _
      $region28: #{tpu_custom_call.1} parent=5 // pred_fallthru
        _
      %p186 = scmp.le.s32.totalorder 1, %s17
      %p187 = scmp.lt.s32.totalorder %s17, 3
      %p188 = pnand %p186, %p187
      %p189 = pneg %p188
      // Predicated region
      $region33: #{tpu_custom_call.1} parent=5 // pred_check
        _
      $region34: #{tpu_custom_call.1} parent=5 // pred_check_branch
        %191 = sbr.rel (%p188) target = $region36
      $region35: #{tpu_custom_call.1} parent=5 // pred_region
        %s192 = ssub.s32 %s17, 1
        %s193 = sand.u32 %s30, 1
        %s194 = scalar_lea.sflag [#allocation3], %s193
        %s195 = sand.u32 %s30, 1
        %s196 = smul.addr %s195, 8
        %s197 = scalar_lea.vmem [#allocation2], %s196
        // Predicated region
        $region37: #{tpu_custom_call.1} parent=35 // pred_check
          %p198 = pneg %p43
        $region38: #{tpu_custom_call.1} parent=35 // pred_check_branch
          %200 = sbr.rel (%p198) target = $region40
        $region39: #{tpu_custom_call.1} parent=35 // pred_region
          %201 = dma.done %s194, 128
        $region40: #{tpu_custom_call.1} parent=35 // pred_fallthru
          _
        // Predicated region
        $region41: #{tpu_custom_call.1} parent=35 // pred_check
          %p202 = pneg %p64
        $region42: #{tpu_custom_call.1} parent=35 // pred_check_branch
          %204 = sbr.rel (%p202) target = $region44
        $region43: #{tpu_custom_call.1} parent=35 // pred_region
          %205 = dma.done [#allocation6], 128
        $region44: #{tpu_custom_call.1} parent=35 // pred_fallthru
          _
        %s206 = sand.u32 %s30, 1
        %s207 = scalar_lea.sflag [#allocation3], %s206
        %s208 = sand.u32 %s30, 1
        %s209 = smul.addr %s208, 8
        %s210 = scalar_lea.vmem [#allocation2], %s209
        %p211 = pneg %p43
        %p212 = pneg %p40
        %p213 = pneg %p64
        %p214 = pneg %p61
        %p215 = pneg %p85
        %p216 = pneg %p82
        %p217 = pneg %p106
        %p218 = pneg %p103
        %p219 = pneg %p132
        %p220 = pneg %p129
        %s221 = sand.u32 %s119, 1
        %s222 = scalar_lea.sflag [#allocation4], %s221
        %s223 = sand.u32 %s119, 1
        %s224 = smul.addr %s223, 8
        %s225 = scalar_lea.vmem [#allocation7], %s224
        %v226 = vld [vmem:[%s197] sm:$0xff]
        %v227 = vld [vmem:[#allocation5] sm:$0xff]
        %v228 = vadd.f32 %v226, %v227
        %vm229 = vcmask 261120
        %v230 = vsel %vm229, %v228, 0.0
        %231 = vadd.xlane.f32.xlu0 %v230
        %v232 = vpop.xlane.xlu0 %231
        %v233 = vrcp.pop 32.0
        %v234 = vmul.f32 %v232, %v233
        %v235 = vsub.f32 %v228, %v234
        %v236 = vmul.f32 %v235, %v235
        %v237 = vsel %vm229, %v236, 0.0
        %238 = vadd.xlane.f32.xlu0 %v237
        %v239 = vpop.xlane.xlu0 %238
        %v240 = vmul.f32 %v239, %v233
        %v241 = vadd.f32 %v240, 1e-05
        %v242 = vrsqrt.pop %v241
        %v243 = vmul.f32 %v235, %v242
        %v244 = vld [vmem:[%s2] sm:$0x1]
        %v246 = vlaneseq
        %v247 = vshrl.u32 %v246, 7
        %v248 = vsub.s32 0, %v247
        %v249 = vrot.slane %v244, %v248
        %v251 = vmul.f32 %v243, %v249
        %v252 = vld [vmem:[%s3] sm:$0x1]
        %v254 = vlaneseq
        %v255 = vshrl.u32 %v254, 7
        %v256 = vsub.s32 0, %v255
        %v257 = vrot.slane %v252, %v256
        %v259 = vadd.f32 %v251, %v257
        %260 = vst.msk [vmem:[%s225] sm:$0xff] %vm229, %v259
        %s261 = sand.u32 %s119, 1
        %s262 = scalar_lea.sflag [#allocation4], %s261
        %s263 = sand.u32 %s119, 1
        %s264 = smul.addr %s263, 8
        %s265 = scalar_lea.vmem [#allocation7], %s264
        // Predicated region
        $region45: #{tpu_custom_call.1} parent=35 // pred_check
          %p266 = pneg %p129
        $region46: #{tpu_custom_call.1} parent=35 // pred_check_branch
          %268 = sbr.rel (%p266) target = $region48
        $region47: #{tpu_custom_call.1} parent=35 // pred_region
          %s270 = ssub.s32 128, 128
          %271 = vsyncadd %s262, %s270
          %s272 = smul.addr %s22, 128
          %s273 = scalar_lea.hbm %s4, %s272
          %s275 = sshll.u32 %s265, 4
          %s276 = int_to_ptr.vmem [resolvable:$true] %s275
          %278 = dma.vmem_to_hbm [thread:$0]  %s276, 128, %s273, %s262
        $region48: #{tpu_custom_call.1} parent=35 // pred_fallthru
          _
      $region36: #{tpu_custom_call.1} parent=5 // pred_fallthru
        _
      %p279 = scmp.le.s32.totalorder 2, %s17
      // Predicated region
      $region49: #{tpu_custom_call.1} parent=5 // pred_check
        %p280 = pneg %p279
      $region50: #{tpu_custom_call.1} parent=5 // pred_check_branch
        %282 = sbr.rel (%p280) target = $region52
      $region51: #{tpu_custom_call.1} parent=5 // pred_region
        %s283 = ssub.s32 %s17, 2
        // Predicated region
        $region53: #{tpu_custom_call.1} parent=51 // pred_check
          %p284 = pneg %p135
        $region54: #{tpu_custom_call.1} parent=51 // pred_check_branch
          %286 = sbr.rel (%p284) target = $region56
        $region55: #{tpu_custom_call.1} parent=51 // pred_region
          %s287 = sand.u32 %s120, 1
          %s288 = scalar_lea.sflag [#allocation4], %s287
          %s289 = sand.u32 %s120, 1
          %s290 = smul.addr %s289, 8
          %s291 = scalar_lea.vmem [#allocation7], %s290
          %292 = dma.done %s288, 128
        $region56: #{tpu_custom_call.1} parent=51 // pred_fallthru
          _
      $region52: #{tpu_custom_call.1} parent=5 // pred_fallthru
        _
    $region6: #{tpu_custom_call.1} parent=1 // loop_footer
      %s21 = sadd.s32 1, %s17
    $region7: #{tpu_custom_call.1} parent=1 // loop_footer_branch
      %16 = sbr.rel target = $region3
    $region8: #{tpu_custom_call.1} parent=1 // loop_exit
      _
    %293 = vsyncpa [#allocation3], 1
    %s294 = scalar_lea.sflag [#allocation3], 1
    %295 = vsyncpa %s294, 1
    %296 = vsyncpa [#allocation6], 1
    %297 = vsyncpa [#allocation4], 1
    %s298 = scalar_lea.sflag [#allocation4], 1
    %299 = vsyncpa %s298, 1

</llo_original>
